<compile_context>
chip_gen: v6e
topology: v6e:2x2x1
jax: 0.10.0
libtpu: 0.0.40
codegen_flags: <defaults>
</compile_context>

<pallas_src>
import jax
import jax.numpy as jnp
from jax import lax
from jax.experimental import pallas as pl
from jax.experimental.pallas import tpu as pltpu


_VMEM_LIMIT = 48 * 1024 * 1024  # fits v7x (64 MiB) with headroom; fine on v5e/v6e


def _round_up(x, m):
    return (x + m - 1) // m * m


def _row_tile(rows):
    """Fixed row tile: 256 for large inputs, else the (8-aligned) full rows."""
    if rows >= 256:
        return 256
    return _round_up(rows, 8)


def _seq_tile(seq):
    """Largest nice query tile dividing S; falls back to full S."""
    for t in (256, 128, 64, 32, 16, 8):
        if seq % t == 0:
            return t
    return seq


# --------------------------------------------------------------------------
# Kernel 1: fused QKV projection.  One (tm, D) x (D, 3D) MXU matmul per step,
# bias added in f32, then split into three lane-dense (tm, D) outputs.
# The learnable scale is folded into q here (data already in registers).
# --------------------------------------------------------------------------
def _qkv_kernel(scale_ref, x_ref, w_ref, b_ref, q_ref, k_ref, v_ref):
    d = q_ref.shape[-1]
    acc = jnp.dot(x_ref[...], w_ref[...], preferred_element_type=jnp.float32)
    acc = acc + b_ref[...]
    q_ref[...] = (acc[:, :d] * scale_ref[0]).astype(q_ref.dtype)
    k_ref[...] = acc[:, d:2 * d].astype(k_ref.dtype)
    v_ref[...] = acc[:, 2 * d:].astype(v_ref.dtype)


# --------------------------------------------------------------------------
# Kernel 2: attention core.  Per (batch, query-tile) step; K/V (S, D) stay
# resident across query tiles of the same batch.  Heads are processed with
# static slices of the lane axis; softmax normalization is deferred to a
# single approx reciprocal per row.
# --------------------------------------------------------------------------
def _make_attn_kernel(num_heads, head_dim):
    def kernel(q_ref, k_ref, v_ref, o_ref):
        for h in range(num_heads):
            lo = h * head_dim
            hi = lo + head_dim
            qh = q_ref[:, lo:hi]          # (tq, hd) -- scale already folded in
            kh = k_ref[:, lo:hi]          # (S, hd)
            # s[i, j] = q_i . k_j   (MXU fed in input dtype, f32 accumulation)
            s = lax.dot_general(qh, kh, (((1,), (1,)), ((), ())),
                                preferred_element_type=jnp.float32)   # (tq, S)
            m = jnp.max(s, axis=-1, keepdims=True)
            p = jnp.exp(s - m)                                        # unnormalized
            l = jnp.sum(p, axis=-1, keepdims=True)
            ctx = jnp.dot(p.astype(v_ref.dtype), v_ref[:, lo:hi],
                          preferred_element_type=jnp.float32)         # (tq, hd)
            ctx = ctx * pl.reciprocal(l, approx=True)                 # deferred norm
            o_ref[:, lo:hi] = ctx.astype(o_ref.dtype)
    return kernel


# --------------------------------------------------------------------------
# Kernel 3: plain row-tiled linear  y = x @ W^T + b  (used for proj_linear).
# K = D feeds the full MXU depth; the weight is resident in VMEM.
# --------------------------------------------------------------------------
def _linear_kernel(x_ref, w_ref, b_ref, o_ref):
    acc = jnp.dot(x_ref[...], w_ref[...], preferred_element_type=jnp.float32)
    o_ref[...] = (acc + b_ref[...]).astype(o_ref.dtype)


# --------------------------------------------------------------------------
# Wrapper
# --------------------------------------------------------------------------
def attention_forward(x, w_qkv, b_qkv, w_proj, b_proj, scale, num_heads):
    """Forward pass of the PyTorch `Attention` module.

    x      : (B, S, D)
    w_qkv  : (3D, D), b_qkv: (3D,)   -- nn.Linear convention (y = x W^T + b)
    w_proj : (D, D),  b_proj: (D,)
    scale  : (1,) learnable scalar (head_dim ** -0.5 at init)
    """
    B, S, D = x.shape
    assert D % num_heads == 0, "input_dim must be divisible by num_heads"
    hd = D // num_heads
    three_d = 3 * D
    dtype = x.dtype
    isz = jnp.dtype(dtype).itemsize

    rows = B * S
    tm = _row_tile(rows)
    rows_p = _round_up(rows, tm)
    tq = _seq_tile(S)

    # Weight-only layout glue (tiny, reused across calls under jit).
    x2 = x.reshape(rows, D)
    if rows_p != rows:
        x2 = jnp.pad(x2, ((0, rows_p - rows), (0, 0)))
    w_qkv_t = jnp.asarray(w_qkv.T, dtype)                  # (D, 3D)
    b_qkv_r = jnp.asarray(b_qkv.reshape(1, three_d), dtype)
    w_proj_t = jnp.asarray(w_proj.T, dtype)                # (D, D)
    b_proj_r = jnp.asarray(b_proj.reshape(1, D), dtype)
    scale_s = jnp.asarray(scale, jnp.float32).reshape(1)

    # ---- 1. QKV projection (q/k/v emitted separately, scale folded into q) --
    q_flat, k_flat, v_flat = pl.pallas_call(
        _qkv_kernel,
        out_shape=tuple(jax.ShapeDtypeStruct((rows_p, D), dtype) for _ in range(3)),
        grid_spec=pltpu.PrefetchScalarGridSpec(
            num_scalar_prefetch=0,
            grid=(rows_p // tm,),
            in_specs=[
                pl.BlockSpec(memory_space=pltpu.MemorySpace.SMEM),   # scale
                pl.BlockSpec((tm, D), lambda i: (i, 0)),             # x rows
                pl.BlockSpec((D, three_d), lambda i: (0, 0)),        # W resident
                pl.BlockSpec((1, three_d), lambda i: (0, 0)),        # bias resident
            ],
            out_specs=[
                pl.BlockSpec((tm, D), lambda i: (i, 0)),
                pl.BlockSpec((tm, D), lambda i: (i, 0)),
                pl.BlockSpec((tm, D), lambda i: (i, 0)),
            ],
        ),
        compiler_params=pltpu.CompilerParams(
            dimension_semantics=("parallel",),
            vmem_limit_bytes=_VMEM_LIMIT),
        cost_estimate=pl.CostEstimate(
            flops=2 * rows_p * D * three_d,
            transcendentals=0,
            bytes_accessed=(rows_p * D + D * three_d + three_d
                            + 3 * rows_p * D) * isz),
    )(scale_s, x2, w_qkv_t, b_qkv_r)

    q3 = q_flat[:rows].reshape(B, S, D)
    k3 = k_flat[:rows].reshape(B, S, D)
    v3 = v_flat[:rows].reshape(B, S, D)

    # ---- 2. attention core: grid (B, query tiles), K/V resident per batch ---
    kv_spec = pl.BlockSpec((None, S, D), lambda b, qi: (b, 0, 0))
    ctx = pl.pallas_call(
        _make_attn_kernel(num_heads, hd),
        out_shape=jax.ShapeDtypeStruct((B, S, D), dtype),
        grid_spec=pltpu.PrefetchScalarGridSpec(
            num_scalar_prefetch=0,
            grid=(B, S // tq),
            in_specs=[
                pl.BlockSpec((None, tq, D), lambda b, qi: (b, qi, 0)),  # q tile
                kv_spec,                                                # k
                kv_spec,                                                # v
            ],
            out_specs=pl.BlockSpec((None, tq, D), lambda b, qi: (b, qi, 0)),
        ),
        compiler_params=pltpu.CompilerParams(
            dimension_semantics=("parallel", "parallel"),
            vmem_limit_bytes=_VMEM_LIMIT),
        cost_estimate=pl.CostEstimate(
            flops=4 * B * S * S * D,
            transcendentals=B * num_heads * S * S,
            bytes_accessed=4 * B * S * D * isz),
    )(q3, k3, v3)

    # ---- 3. output projection: row-tiled K=D matmul, weight resident --------
    ctx2 = ctx.reshape(rows, D)
    if rows_p != rows:
        ctx2 = jnp.pad(ctx2, ((0, rows_p - rows), (0, 0)))
    out_flat = pl.pallas_call(
        _linear_kernel,
        out_shape=jax.ShapeDtypeStruct((rows_p, D), dtype),
        grid_spec=pltpu.PrefetchScalarGridSpec(
            num_scalar_prefetch=0,
            grid=(rows_p // tm,),
            in_specs=[
                pl.BlockSpec((tm, D), lambda i: (i, 0)),
                pl.BlockSpec((D, D), lambda i: (0, 0)),      # resident weight
                pl.BlockSpec((1, D), lambda i: (0, 0)),      # resident bias
            ],
            out_specs=pl.BlockSpec((tm, D), lambda i: (i, 0)),
        ),
        compiler_params=pltpu.CompilerParams(
            dimension_semantics=("parallel",),
            vmem_limit_bytes=_VMEM_LIMIT),
        cost_estimate=pl.CostEstimate(
            flops=2 * rows_p * D * D,
            transcendentals=0,
            bytes_accessed=(2 * rows_p * D + D * D + D) * isz),
    )(ctx2, w_proj_t, b_proj_r)

    return out_flat[:rows].reshape(B, S, D)


# --------------------------------------------------------------------------
# Pure-JAX reference (mirrors the PyTorch forward)
# --------------------------------------------------------------------------
def attention_reference(x, w_qkv, b_qkv, w_proj, b_proj, scale, num_heads):
    B, S, D = x.shape
    hd = D // num_heads
    qkv = x @ w_qkv.T + b_qkv                              # (B, S, 3D)
    qkv = qkv.reshape(B, S, 3, num_heads, hd).transpose(2, 0, 3, 1, 4)
    q, k, v = qkv[0], qkv[1], qkv[2]                       # (B, H, S, hd)
    s = jnp.einsum('bhqd,bhkd->bhqk', q, k) * scale[0]
    p = jax.nn.softmax(s, axis=-1)
    ctx = jnp.einsum('bhqk,bhkd->bhqd', p, v)
    ctx = ctx.transpose(0, 2, 1, 3).reshape(B, S, D)
    return ctx @ w_proj.T + b_proj


if __name__ == "__main__":
    B, S, D, H = 2, 8, 64, 8
    hd = D // H

    key = jax.random.PRNGKey(0)
    kx, k1, k2, k3, k4 = jax.random.split(key, 5)
    x = jax.random.normal(kx, (B, S, D), jnp.float32)

    # PyTorch nn.Linear default init: U(-1/sqrt(fan_in), +1/sqrt(fan_in))
    lim = 1.0 / (D ** 0.5)
    w_qkv = jax.random.uniform(k1, (3 * D, D), jnp.float32, -lim, lim)
    b_qkv = jax.random.uniform(k2, (3 * D,), jnp.float32, -lim, lim)
    w_proj = jax.random.uniform(k3, (D, D), jnp.float32, -lim, lim)
    b_proj = jax.random.uniform(k4, (D,), jnp.float32, -lim, lim)
    scale = jnp.asarray([hd ** -0.5], jnp.float32)

    out = jax.block_until_ready(
        attention_forward(x, w_qkv, b_qkv, w_proj, b_proj, scale, H))
    ref = attention_reference(x, w_qkv, b_qkv, w_proj, b_proj, scale, H)

    assert out.shape == (B, S, D)
    max_diff = float(jnp.max(jnp.abs(out - ref)))
    assert jnp.allclose(out, ref, atol=1e-2, rtol=1e-2), (
        f"mismatch vs reference, max abs diff = {max_diff}")
    print("KERNEL_OK")
</pallas_src>

<mosaic_0001>
module attributes {stable_mosaic.version = 11 : i64} {
  func.func @_qkv_kernel(%arg0: i32, %arg1: memref<1xf32, #tpu.memory_space<smem>>, %arg2: memref<16x64xf32, #tpu.memory_space<vmem>>, %arg3: memref<64x192xf32, #tpu.memory_space<vmem>>, %arg4: memref<1x192xf32, #tpu.memory_space<vmem>>, %arg5: memref<16x64xf32, #tpu.memory_space<vmem>>, %arg6: memref<16x64xf32, #tpu.memory_space<vmem>>, %arg7: memref<16x64xf32, #tpu.memory_space<vmem>>) attributes {dimension_semantics = [#tpu.dimension_semantics<parallel>], iteration_bounds = array<i64: 1>, scalar_prefetch = 0 : i64, scratch_operands = 0 : i64, tpu.core_type = #tpu.core_type<tc>, window_params = [{transform_indices = @transform_0, window_bounds = array<i64: 1>}, {transform_indices = @transform_1, window_bounds = array<i64: 16, 64>}, {pipeline_mode = #tpu.pipeline_mode<synchronous>, transform_indices = @transform_2, window_bounds = array<i64: 64, 192>}, {pipeline_mode = #tpu.pipeline_mode<synchronous>, transform_indices = @transform_3, window_bounds = array<i64: 1, 192>}, {transform_indices = @transform_4, window_bounds = array<i64: 16, 64>}, {transform_indices = @transform_5, window_bounds = array<i64: 16, 64>}, {transform_indices = @transform_6, window_bounds = array<i64: 16, 64>}]} {
    %c0 = arith.constant 0 : index
    %c0_0 = arith.constant 0 : index
    %0 = vector.load %arg2[%c0, %c0_0] : memref<16x64xf32, #tpu.memory_space<vmem>>, vector<16x64xf32>
    %c0_1 = arith.constant 0 : index
    %c0_2 = arith.constant 0 : index
    %1 = vector.load %arg3[%c0_1, %c0_2] : memref<64x192xf32, #tpu.memory_space<vmem>>, vector<64x192xf32>
    %cst = arith.constant dense<0.000000e+00> : vector<16x192xf32>
    %2 = tpu.matmul %0, %1, %cst {dimension_numbers = #tpu.dot_dimension_numbers<[1], [0], [0], [1], [0, 0, 1, 1], [], []>} : vector<16x64xf32>, vector<64x192xf32>, vector<16x192xf32> -> vector<16x192xf32>
    %c0_3 = arith.constant 0 : index
    %c0_4 = arith.constant 0 : index
    %3 = vector.load %arg4[%c0_3, %c0_4] : memref<1x192xf32, #tpu.memory_space<vmem>>, vector<1x192xf32>
    %4 = vector.broadcast %3 : vector<1x192xf32> to vector<16x192xf32>
    %5 = arith.addf %2, %4 : vector<16x192xf32>
    %6 = vector.extract_strided_slice %5 {offsets = [0, 0], sizes = [16, 64], strides = [1, 1]} : vector<16x192xf32> to vector<16x64xf32>
    %c0_5 = arith.constant 0 : index
    %7 = memref.load %arg1[%c0_5] : memref<1xf32, #tpu.memory_space<smem>>
    %8 = vector.broadcast %7 : f32 to vector<16x64xf32>
    %9 = arith.mulf %6, %8 : vector<16x64xf32>
    %c0_6 = arith.constant 0 : index
    %c0_7 = arith.constant 0 : index
    %10 = vector.load %arg5[%c0_6, %c0_7] : memref<16x64xf32, #tpu.memory_space<vmem>>, vector<16x64xf32>
    tpu.vector_store %arg5[%c0_6, %c0_7], %9 {strides = array<i32>} : memref<16x64xf32, #tpu.memory_space<vmem>>, vector<16x64xf32>,
    %11 = vector.extract_strided_slice %5 {offsets = [0, 64], sizes = [16, 64], strides = [1, 1]} : vector<16x192xf32> to vector<16x64xf32>
    %c0_8 = arith.constant 0 : index
    %c0_9 = arith.constant 0 : index
    %12 = vector.load %arg6[%c0_8, %c0_9] : memref<16x64xf32, #tpu.memory_space<vmem>>, vector<16x64xf32>
    tpu.vector_store %arg6[%c0_8, %c0_9], %11 {strides = array<i32>} : memref<16x64xf32, #tpu.memory_space<vmem>>, vector<16x64xf32>,
    %13 = vector.extract_strided_slice %5 {offsets = [0, 128], sizes = [16, 64], strides = [1, 1]} : vector<16x192xf32> to vector<16x64xf32>
    %c0_10 = arith.constant 0 : index
    %c0_11 = arith.constant 0 : index
    %14 = vector.load %arg7[%c0_10, %c0_11] : memref<16x64xf32, #tpu.memory_space<vmem>>, vector<16x64xf32>
    tpu.vector_store %arg7[%c0_10, %c0_11], %13 {strides = array<i32>} : memref<16x64xf32, #tpu.memory_space<vmem>>, vector<16x64xf32>,
    return
  }
  func.func @transform_0(%arg0: i32) -> i32 {
    %c0_i32 = arith.constant 0 : i32
    %c0_i32_0 = arith.constant 0 : i32
    return %c0_i32 : i32
  }
  func.func @transform_1(%arg0: i32) -> (i32, i32) {
    %c0_i32 = arith.constant 0 : i32
    %c0_i32_0 = arith.constant 0 : i32
    return %arg0, %c0_i32 : i32, i32
  }
  func.func @transform_2(%arg0: i32) -> (i32, i32) {
    %c0_i32 = arith.constant 0 : i32
    %c0_i32_0 = arith.constant 0 : i32
    %c0_i32_1 = arith.constant 0 : i32
    return %c0_i32, %c0_i32_0 : i32, i32
  }
  func.func @transform_3(%arg0: i32) -> (i32, i32) {
    %c0_i32 = arith.constant 0 : i32
    %c0_i32_0 = arith.constant 0 : i32
    %c0_i32_1 = arith.constant 0 : i32
    return %c0_i32, %c0_i32_0 : i32, i32
  }
  func.func @transform_4(%arg0: i32) -> (i32, i32) {
    %c0_i32 = arith.constant 0 : i32
    %c0_i32_0 = arith.constant 0 : i32
    return %arg0, %c0_i32 : i32, i32
  }
  func.func @transform_5(%arg0: i32) -> (i32, i32) {
    %c0_i32 = arith.constant 0 : i32
    %c0_i32_0 = arith.constant 0 : i32
    return %arg0, %c0_i32 : i32, i32
  }
  func.func @transform_6(%arg0: i32) -> (i32, i32) {
    %c0_i32 = arith.constant 0 : i32
    %c0_i32_0 = arith.constant 0 : i32
    return %arg0, %c0_i32 : i32, i32
  }
}

</mosaic_0001>

<llo_original>
// kernel: tpu_custom_call.1
$region0: #{tpu_custom_call.1}
  #allocation0 [shape = 'u32[]', space=smem, size = 0x4, offset = 0x4, fixed_abs, tag = 'smem constant byte address 0x4 - core index']
  #allocation1 [shape = 'u32[144,128]{1,0:T(1,128)}', space=vmem, size = 0x12000, scoped, tag = 'internal scratch']
  #allocation2 [shape = 'f32[1]{0:T(128)S(6)}', space=smem, size = 0x200, scoped, tag = 'scoped memory for tpu_custom_call.1']
  %s0 = inlined_call_operand.<no memory space> [shape: f32[1], index: 0, kind: input, shape index: {}]
  %s1 = inlined_call_operand.hbm [shape: f32[16,64], index: 1, kind: input, shape index: {}]
  %s2 = inlined_call_operand.hbm [shape: f32[64,192], index: 2, kind: input, shape index: {}]
  %s3 = inlined_call_operand.vmem [shape: f32[1,192], index: 3, kind: input, shape index: {}]
  %s4 = inlined_call_operand.hbm [shape: f32[16,64], index: 4, kind: output, shape index: {0}]
  %s5 = inlined_call_operand.hbm [shape: f32[16,64], index: 5, kind: output, shape index: {1}]
  %s6 = inlined_call_operand.hbm [shape: f32[16,64], index: 6, kind: output, shape index: {2}]
  %7 = xla_tuple %s4, %s5, %s6
  %s8 = sld [smem:[#allocation0]]
  $region50: #{tpu_custom_call.1} parent=0
    _
  %s10 = ssub.s32 1, %s8
  %s11 = scalar_select 0, %s10, %s8
  %12 = sst [smem:[#allocation2]] %s0
  $region1: #{tpu_custom_call.1} parent=0
    #allocation3 [shape = 'u8[8192]{0}', space=vmem, size = 0x2000, scoped, tag = 'input window, operand 1, single buffered']
    #allocation4 [shape = 's32[1]{0}', space=sflag, size = 0x4, scoped, tag = 'scoped memory for tpu_custom_call.1']
    #allocation5 [shape = 's32[1]{0}', space=sflag, size = 0x4, scoped, tag = 'scoped memory for tpu_custom_call.1']
    #allocation6 [shape = 'u8[65536]{0}', space=vmem, size = 0x10000, scoped, tag = 'input window, operand 2, single buffered']
    #allocation7 [shape = 's32[1]{0}', space=sflag, size = 0x4, scoped, tag = 'scoped memory for tpu_custom_call.1']
    #allocation8 [shape = 'u8[8192]{0}', space=vmem, size = 0x2000, scoped, tag = 'output window, operand 0, single buffered']
    #allocation9 [shape = 'u8[8192]{0}', space=vmem, size = 0x2000, scoped, tag = 'output window, operand 1, single buffered']
    #allocation10 [shape = 's32[1]{0}', space=sflag, size = 0x4, scoped, tag = 'scoped memory for tpu_custom_call.1']
    #allocation11 [shape = 'u8[8192]{0}', space=vmem, size = 0x2000, scoped, tag = 'output window, operand 2, single buffered']
    %13 = vsyncpa [#allocation4], 0
    %14 = vsyncpa [#allocation7], 0
    %15 = vsyncpa [#allocation5], 0
    %16 = vsyncpa [#allocation10], 0
    // Predicated region
    $region2: #{tpu_custom_call.1} parent=1 // pred_check
      _
    $region3: #{tpu_custom_call.1} parent=1 // pred_check_branch
      %18 = sbr.rel (0) target = $region5
    $region4: #{tpu_custom_call.1} parent=1 // pred_region
      _
    $region5: #{tpu_custom_call.1} parent=1 // pred_fallthru
      _
    // Predicated region
    $region6: #{tpu_custom_call.1} parent=1 // pred_check
      _
    $region7: #{tpu_custom_call.1} parent=1 // pred_check_branch
      %20 = sbr.rel (0) target = $region9
    $region8: #{tpu_custom_call.1} parent=1 // pred_region
      %s22 = ssub.s32 256, 256
      %23 = vsyncadd [#allocation4], %s22
      %s24 = sshll.u32 [#allocation3], 4
      %s25 = int_to_ptr.vmem [resolvable:$true] %s24
      %30 = dma.hbm_to_vmem [thread:$0]  %s1, 256, %s25, [#allocation4], 128, 128, 8
    $region9: #{tpu_custom_call.1} parent=1 // pred_fallthru
      _
    // Predicated region
    $region10: #{tpu_custom_call.1} parent=1 // pred_check
      _
    $region11: #{tpu_custom_call.1} parent=1 // pred_check_branch
      %32 = sbr.rel (0) target = $region13
    $region12: #{tpu_custom_call.1} parent=1 // pred_region
      %s34 = ssub.s32 2048, 2048
      %35 = vsyncadd [#allocation7], %s34
      %s36 = sshll.u32 [#allocation6], 4
      %s37 = int_to_ptr.vmem [resolvable:$true] %s36
      %42 = dma.hbm_to_vmem [thread:$0]  %s2, 2048, %s37, [#allocation7], 256, 256, 16
    $region13: #{tpu_custom_call.1} parent=1 // pred_fallthru
      _
    // Predicated region
    $region14: #{tpu_custom_call.1} parent=1 // pred_check
      _
    $region15: #{tpu_custom_call.1} parent=1 // pred_check_branch
      %44 = sbr.rel (0) target = $region17
    $region16: #{tpu_custom_call.1} parent=1 // pred_region
      _
    $region17: #{tpu_custom_call.1} parent=1 // pred_fallthru
      _
    // Predicated region
    $region18: #{tpu_custom_call.1} parent=1 // pred_check
      _
    $region19: #{tpu_custom_call.1} parent=1 // pred_check_branch
      %46 = sbr.rel (0) target = $region21
    $region20: #{tpu_custom_call.1} parent=1 // pred_region
      %47 = dma.done [#allocation4], 256
    $region21: #{tpu_custom_call.1} parent=1 // pred_fallthru
      _
    // Predicated region
    $region22: #{tpu_custom_call.1} parent=1 // pred_check
      _
    $region23: #{tpu_custom_call.1} parent=1 // pred_check_branch
      %49 = sbr.rel (0) target = $region25
    $region24: #{tpu_custom_call.1} parent=1 // pred_region
      %50 = dma.done [#allocation7], 2048
    $region25: #{tpu_custom_call.1} parent=1 // pred_fallthru
      _
    %v51 = vld [vmem:[#allocation3] sm:$0xff]
    %v52 = vld [vmem:[#allocation3 + $0x8] sm:$0xff]
    %v53 = vld [vmem:[#allocation6] sm:$0xff]
    %v54 = vld [vmem:[#allocation6 + $0x8] sm:$0xff]
    %v55 = vld [vmem:[#allocation6 + $0x10] sm:$0xff]
    %v56 = vld [vmem:[#allocation6 + $0x18] sm:$0xff]
    %v57 = vld [vmem:[#allocation6 + $0x20] sm:$0xff]
    %v58 = vld [vmem:[#allocation6 + $0x28] sm:$0xff]
    %v59 = vld [vmem:[#allocation6 + $0x30] sm:$0xff]
    %v60 = vld [vmem:[#allocation6 + $0x38] sm:$0xff]
    %v61 = vld [vmem:[#allocation6 + $0x40] sm:$0xff]
    %v62 = vld [vmem:[#allocation6 + $0x48] sm:$0xff]
    %v63 = vld [vmem:[#allocation6 + $0x50] sm:$0xff]
    %v64 = vld [vmem:[#allocation6 + $0x58] sm:$0xff]
    %v65 = vld [vmem:[#allocation6 + $0x60] sm:$0xff]
    %v66 = vld [vmem:[#allocation6 + $0x68] sm:$0xff]
    %v67 = vld [vmem:[#allocation6 + $0x70] sm:$0xff]
    %v68 = vld [vmem:[#allocation6 + $0x78] sm:$0xff]
    %v69 = vld [vmem:[%s3] sm:$0x3]
    %v71 = vlaneseq
    %v72 = vshrl.u32 %v71, 7
    %v73 = vsub.s32 0, %v72
    %v74 = vrot.slane %v69, %v73
    %v75 = vlaneseq
    %v76 = vshrl.u32 %v75, 7
    %v77 = vsub.s32 1, %v76
    %v78 = vrot.slane %v69, %v77
    %vm81 = vcmask 523264
    %v83 = vsel %vm81, %v51, 0
    %v86 = vsel %vm81, %v52, 0
    %88 = vmatprep.subr.mxu0 0.0
    %89 = vmatpush1.msra.mxu0 0.0
    %90 = vmatprep.subr.mxu0 0.0
    %91 = vmatpush1.msra.mxu0 0.0
    %92 = vmatprep.subr.mxu0 0.0
    %93 = vmatpush1.msra.mxu0 0.0
    %94 = vmatprep.subr.mxu0 0.0
    %95 = vmatpush1.msra.mxu0 0.0
    %96 = vmatprep.subr.mxu0 0.0
    %97 = vmatpush1.msra.mxu0 0.0
    %98 = vmatprep.subr.mxu0 0.0
    %99 = vmatpush1.msra.mxu0 0.0
    %100 = vmatprep.subr.mxu0 0.0
    %101 = vmatpush1.msra.mxu0 0.0
    %102 = vmatprep.subr.mxu0 0.0
    %103 = vmatpush1.msra.mxu0 0.0
    %104 = vmatprep.subr.mxu0 %v68
    %105 = vmatpush1.msra.mxu0 %v67
    %106 = vmatprep.subr.mxu0 %v66
    %107 = vmatpush1.msra.mxu0 %v65
    %108 = vmatprep.subr.mxu0 %v64
    %109 = vmatpush1.msra.mxu0 %v63
    %110 = vmatprep.subr.mxu0 %v62
    %111 = vmatpush1.msra.mxu0 %v61
    %112 = vmatprep.subr.mxu0 %v60
    %113 = vmatpush1.msra.mxu0 %v59
    %114 = vmatprep.subr.mxu0 %v58
    %115 = vmatpush1.msra.mxu0 %v57
    %116 = vmatprep.subr.mxu0 %v56
    %117 = vmatpush1.msra.mxu0 %v55
    %118 = vmatprep.subr.mxu0 %v54
    %119 = vmatpush1.msra.mxu0 %v53
    %120 = vmatprep.subr.mxu0 0.0
    %121 = vmatpush2.msra.mxu0 0.0
    %122 = vmatprep.subr.mxu0 0.0
    %123 = vmatpush2.msra.mxu0 0.0
    %124 = vmatprep.subr.mxu0 0.0
    %125 = vmatpush2.msra.mxu0 0.0
    %126 = vmatprep.subr.mxu0 0.0
    %127 = vmatpush2.msra.mxu0 0.0
    %128 = vmatprep.subr.mxu0 0.0
    %129 = vmatpush2.msra.mxu0 0.0
    %130 = vmatprep.subr.mxu0 0.0
    %131 = vmatpush2.msra.mxu0 0.0
    %132 = vmatprep.subr.mxu0 0.0
    %133 = vmatpush2.msra.mxu0 0.0
    %134 = vmatprep.subr.mxu0 0.0
    %135 = vmatpush2.msra.mxu0 0.0
    %136 = vmatprep.subr.mxu0 0.0
    %137 = vmatpush2.msra.mxu0 0.0
    %138 = vmatprep.subr.mxu0 0.0
    %139 = vmatpush2.msra.mxu0 0.0
    %140 = vmatprep.subr.mxu0 0.0
    %141 = vmatpush2.msra.mxu0 0.0
    %142 = vmatprep.subr.mxu0 0.0
    %143 = vmatpush2.msra.mxu0 0.0
    %144 = vmatprep.subr.mxu0 0.0
    %145 = vmatpush2.msra.mxu0 0.0
    %146 = vmatprep.subr.mxu0 0.0
    %147 = vmatpush2.msra.mxu0 0.0
    %148 = vmatprep.subr.mxu0 0.0
    %149 = vmatpush2.msra.mxu0 0.0
    %150 = vmatprep.subr.mxu0 0.0
    %151 = vmatpush2.msra.mxu0 0.0
    %152 = vmatprep.mubr.f32.mxu0 0.0
    %153 = vmatmul.mubr.f32.gmra.mxu0 %v83
    %v154 = vpop.f32.mrf.mxu0
    %v155 = vadd.f32 %v74, %v154
    %v156 = vpop.f32.mrf.mxu0
    %v157 = vadd.f32 %v78, %v156
    %158 = vmatprep.mubr.f32.mxu0 0.0
    %159 = vmatmul.mubr.f32.gmra.mxu0 %v86
    %v160 = vpop.f32.mrf.mxu0
    %v161 = vadd.f32 %v74, %v160
    %v162 = vpop.f32.mrf.mxu0
    %v163 = vadd.f32 %v78, %v162
    %164 = vdwg.mxu0
    %s165 = sld [smem:[#allocation2]]
    %v166 = vstv %s165
    %v167 = vmul.f32 %v155, %v166
    %v168 = vmul.f32 %v161, %v166
    %169 = vst.msk [vmem:[#allocation8] sm:$0xff] %vm81, %v167
    %170 = vst.msk [vmem:[#allocation8 + $0x8] sm:$0xff] %vm81, %v168
    %173 = vrot.lane.b32.xlu0 %v155, 64
    %v174 = vpop.permute.xlu0 %173
    %175 = vrot.lane.b32.xlu0 %v161, 64
    %v176 = vpop.permute.xlu0 %175
    %179 = vst.msk [vmem:[#allocation9] sm:$0xff] %vm81, %v174
    %180 = vst.msk [vmem:[#allocation9 + $0x8] sm:$0xff] %vm81, %v176
    %181 = vst.msk [vmem:[#allocation11] sm:$0xff] %vm81, %v157
    %182 = vst.msk [vmem:[#allocation11 + $0x8] sm:$0xff] %vm81, %v163
    // Predicated region
    $region26: #{tpu_custom_call.1} parent=1 // pred_check
      _
    $region27: #{tpu_custom_call.1} parent=1 // pred_check_branch
      %184 = sbr.rel (0) target = $region29
    $region28: #{tpu_custom_call.1} parent=1 // pred_region
      %s186 = ssub.s32 256, 256
      %187 = vsyncadd [#allocation5], %s186
      %s188 = sshll.u32 [#allocation8], 4
      %s189 = int_to_ptr.vmem [resolvable:$true] %s188
      %194 = dma.vmem_to_hbm [thread:$0]  %s189, 256, %s4, [#allocation5], 128, 128, 8
    $region29: #{tpu_custom_call.1} parent=1 // pred_fallthru
      _
    // Predicated region
    $region30: #{tpu_custom_call.1} parent=1 // pred_check
      _
    $region31: #{tpu_custom_call.1} parent=1 // pred_check_branch
      %196 = sbr.rel (0) target = $region33
    $region32: #{tpu_custom_call.1} parent=1 // pred_region
      %s198 = ssub.s32 256, 256
      %199 = vsyncadd [#allocation10], %s198
      %s200 = sshll.u32 [#allocation9], 4
      %s201 = int_to_ptr.vmem [resolvable:$true] %s200
      %206 = dma.vmem_to_hbm [thread:$0]  %s201, 256, %s5, [#allocation10], 128, 128, 8
    $region33: #{tpu_custom_call.1} parent=1 // pred_fallthru
      _
    // Predicated region
    $region34: #{tpu_custom_call.1} parent=1 // pred_check
      _
    $region35: #{tpu_custom_call.1} parent=1 // pred_check_branch
      %208 = sbr.rel (0) target = $region37
    $region36: #{tpu_custom_call.1} parent=1 // pred_region
      %s210 = ssub.s32 256, 256
      %211 = vsyncadd [#allocation10], %s210
      %s212 = sshll.u32 [#allocation11], 4
      %s213 = int_to_ptr.vmem [resolvable:$true] %s212
      %218 = dma.vmem_to_hbm [thread:$0]  %s213, 256, %s6, [#allocation10], 128, 128, 8
    $region37: #{tpu_custom_call.1} parent=1 // pred_fallthru
      _
    // Predicated region
    $region38: #{tpu_custom_call.1} parent=1 // pred_check
      _
    $region39: #{tpu_custom_call.1} parent=1 // pred_check_branch
      %220 = sbr.rel (0) target = $region41
    $region40: #{tpu_custom_call.1} parent=1 // pred_region
      %221 = dma.done [#allocation5], 256
    $region41: #{tpu_custom_call.1} parent=1 // pred_fallthru
      _
    // Predicated region
    $region42: #{tpu_custom_call.1} parent=1 // pred_check
      _
    $region43: #{tpu_custom_call.1} parent=1 // pred_check_branch
      %223 = sbr.rel (0) target = $region45
    $region44: #{tpu_custom_call.1} parent=1 // pred_region
      %224 = dma.done [#allocation10], 256
    $region45: #{tpu_custom_call.1} parent=1 // pred_fallthru
      _
    // Predicated region
    $region46: #{tpu_custom_call.1} parent=1 // pred_check
      _
    $region47: #{tpu_custom_call.1} parent=1 // pred_check_branch
      %226 = sbr.rel (0) target = $region49
    $region48: #{tpu_custom_call.1} parent=1 // pred_region
      %227 = dma.done [#allocation10], 256
    $region49: #{tpu_custom_call.1} parent=1 // pred_fallthru
      _
    %228 = vsyncpa [#allocation4], 1
    %229 = vsyncpa [#allocation7], 1
    %230 = vsyncpa [#allocation5], 1
    %231 = vsyncpa [#allocation10], 1

</llo_original>
